<compile_context>
chip_gen: v7x
topology: tpu7x:2x2x1
jax: 0.10.0
libtpu: 0.0.40
codegen_flags: <defaults>
</compile_context>

<pallas_src>
import functools

import jax
import jax.numpy as jnp
from jax.experimental import pallas as pl
from jax.experimental.pallas import tpu as pltpu


# ----------------------------- fused Pallas kernel --------------------------

def _fused_sparse_mpnn_kernel(
    idx_ref,      # (2E, 2) int32: col0 = [senders ; receivers], col1 = col0 % S
    r_row_ref,    # (1, E)  int32  receivers (row layout, for the scatter one-hot)
    x_ref,        # (N, F)  f32    raw node features (flattened A*S)
    ef_ref,       # (E, EF) f32    raw edge features
    w_node_ref,   # (F, H)         node_proj weight (bias-free)
    w_edge_ref,   # (EF, H)        edge_proj weight
    w_msg_ref,    # (3H, H)        message_proj1 weight ([sender; receiver; edge] blocks)
    w_fc_ref,     # (H, O)         fc weight
    bias_ref,     # (3, max(H,O))  rows: b_edge, b_msg, b_fc (zero padded)
    out_ref,      # (gnn_steps*S, O) f32
    *, A, S, gnn_steps,
):
    N = A * S
    E = ef_ref.shape[0]
    H = w_node_ref.shape[1]
    O = w_fc_ref.shape[1]
    f32 = jnp.float32

    bias = bias_ref[...]
    b_edge = bias[0:1, 0:H]
    b_msg = bias[1:2, 0:H]
    b_fc = bias[2:3, 0:O]
    w_msg = w_msg_ref[...]

    # --- encoders (computed once) -------------------------------------------
    enc = jnp.dot(x_ref[...], w_node_ref[...], preferred_element_type=f32)             # (N, H)
    ef_h = jnp.dot(ef_ref[...], w_edge_ref[...], preferred_element_type=f32) + b_edge  # (E, H)

    # --- one-hots built in-register from the packed indices ------------------
    idx = idx_ref[...]
    node_idx = idx[:, 0:1]                                            # (2E, 1)
    state_idx = idx[:, 1:2]                                           # (2E, 1)  (node % S)
    oh_node = (node_idx == jax.lax.broadcasted_iota(jnp.int32, (2 * E, N), 1)).astype(f32)
    oh_state = (state_idx == jax.lax.broadcasted_iota(jnp.int32, (2 * E, S), 1)).astype(f32)
    rgT = (jax.lax.broadcasted_iota(jnp.int32, (N, E), 0) == r_row_ref[...]).astype(f32)  # (N, E)

    # --- loop-invariant message term: cat([enc[s], enc[r], ef_h]) @ W_msg + b --
    ge = jnp.dot(oh_node, enc, preferred_element_type=f32)                              # (2E, H)
    cat_inv = jnp.concatenate([ge[0:E], ge[E:2 * E], ef_h], axis=1)                     # (E, 3H)
    msg_inv = jnp.dot(cat_inv, w_msg, preferred_element_type=f32) + b_msg               # (E, H)

    ms = []
    prev = None   # (S, H) pooled carry; zero at step 0 -> correction skipped statically
    for step in range(gnn_steps):
        if prev is None:
            msg = jnp.maximum(msg_inv, 0.0)                           # step 0: prev == 0
        else:
            # prev-dependent correction: gather prev[index % S], project by [w1s; w1r]
            gp = jnp.dot(oh_state, prev, preferred_element_type=f32)                    # (2E, H)
            catp = jnp.concatenate([gp[0:E], gp[E:2 * E]], axis=1)                      # (E, 2H)
            corr = jnp.dot(catp, w_msg[0:2 * H, :], preferred_element_type=f32)         # (E, H)
            msg = jnp.maximum(msg_inv + corr, 0.0)                    # msg_activation (ReLU)

        # index_add_(0, receivers, msg) == one_hot(receivers)^T @ msg
        aggr = jnp.dot(rgT, msg, preferred_element_type=f32)                            # (N, H)

        # max over actions of (aggr + enc + B(prev)) == max over actions of (aggr+enc) + prev
        base = aggr + enc
        m = base[0:S, :]
        for a in range(1, A):
            m = jnp.maximum(m, base[a * S:(a + 1) * S, :])                              # (S, H)
        if prev is not None:
            m = m + prev
        ms.append(m)
        prev = m

    # --- deferred fc: one dot + one store for all steps -----------------------
    m_all = jnp.concatenate(ms, axis=0)                                                 # (gnn_steps*S, H)
    out_ref[...] = (jnp.dot(m_all, w_fc_ref[...], preferred_element_type=f32) + b_fc
                    ).astype(out_ref.dtype)


# ----------------------------- wrapper ---------------------------------------

_VMEM = pl.BlockSpec(memory_space=pltpu.MemorySpace.VMEM)


def sparse_mpnn_forward(x, senders, receivers, edge_feat, params, gnn_steps):
    A, S, F = x.shape
    N = A * S
    E = senders.shape[0]
    H = params['w_node'].shape[1]
    O = params['w_fc'].shape[1]
    W = max(H, O)

    s32 = senders.astype(jnp.int32)
    r32 = receivers.astype(jnp.int32)
    node_idx = jnp.concatenate([s32, r32])                    # (2E,)
    state_idx = node_idx % S                                  # (2E,)  node index % num_states
    idx2 = jnp.stack([node_idx, state_idx], axis=1)           # (2E, 2)
    r_row = r32.reshape(1, E)

    def _pad_row(b):
        b = b.astype(jnp.float32)
        return jnp.pad(b, ((0, 0), (0, W - b.shape[1])))

    biases = jnp.concatenate(
        [_pad_row(params['b_edge']), _pad_row(params['b_msg']), _pad_row(params['b_fc'])],
        axis=0)                                               # (3, W)

    kernel = functools.partial(_fused_sparse_mpnn_kernel, A=A, S=S, gnn_steps=gnn_steps)

    out = pl.pallas_call(
        kernel,
        out_shape=jax.ShapeDtypeStruct((gnn_steps * S, O), jnp.float32),
        in_specs=[_VMEM] * 9,
        out_specs=_VMEM,
    )(idx2, r_row,
      x.reshape(N, F).astype(jnp.float32),
      edge_feat.astype(jnp.float32),
      params['w_node'], params['w_edge'], params['w_msg'], params['w_fc'],
      biases)

    return [out[i * S:(i + 1) * S] for i in range(gnn_steps)]


# ----------------------------- pure-JAX reference ----------------------------

def reference_forward(x, senders, receivers, edge_feat_raw, params, gnn_steps):
    A, S, F = x.shape
    N = A * S
    H = params['w_node'].shape[1]
    enc_x = (x.reshape(N, F) @ params['w_node']).reshape(A, S, H)
    ef = edge_feat_raw @ params['w_edge'] + params['b_edge']
    prev = jnp.zeros_like(enc_x)
    outs = []
    for _ in range(gnn_steps):
        cur = (prev + enc_x).reshape(N, H)
        cat = jnp.concatenate([cur[senders], cur[receivers], ef], axis=-1)
        msg = jnp.maximum(cat @ params['w_msg'] + params['b_msg'], 0.0)
        aggr = jnp.zeros((N, H), jnp.float32).at[receivers].add(msg)
        new_x = (aggr + cur).reshape(A, S, H)
        m = jnp.max(new_x, axis=0)
        outs.append(m @ params['w_fc'] + params['b_fc'])
        prev = m[None]
    return outs


# ----------------------------- main ------------------------------------------

if __name__ == "__main__":
    # Small shapes consistent with the module's forward.
    A, S = 4, 8          # num_actions, num_states
    F, EF = 8, 8         # node_features, edge_features
    H, O = 32, 16        # hidden_dim, out_features
    E = 32               # number of edges
    GNN_STEPS = 2
    N = A * S

    key = jax.random.PRNGKey(0)
    ks = jax.random.split(key, 10)

    x = jax.random.normal(ks[0], (A, S, F), jnp.float32)
    senders = jax.random.randint(ks[1], (E,), 0, N, jnp.int32)
    receivers = jax.random.randint(ks[2], (E,), 0, N, jnp.int32)
    edge_feat = jax.random.normal(ks[3], (E, EF), jnp.float32)

    params = {
        # node_proj: Linear(F, H, bias=False)
        'w_node': 0.1 * jax.random.normal(ks[4], (F, H), jnp.float32),
        # edge_proj: Linear(EF, H)
        'w_edge': 0.1 * jax.random.normal(ks[5], (EF, H), jnp.float32),
        'b_edge': 0.1 * jax.random.normal(ks[6], (1, H), jnp.float32),
        # message_proj1: Linear(3H, H)
        'w_msg': 0.1 * jax.random.normal(ks[7], (3 * H, H), jnp.float32),
        'b_msg': 0.1 * jax.random.normal(ks[8], (1, H), jnp.float32),
        # fc: Linear(H, O)
        'w_fc': 0.1 * jax.random.normal(ks[9], (H, O), jnp.float32),
        'b_fc': jnp.zeros((1, O), jnp.float32),
    }

    fwd = jax.jit(functools.partial(sparse_mpnn_forward, gnn_steps=GNN_STEPS))
    outputs = fwd(x, senders, receivers, edge_feat, params)
    outputs = jax.block_until_ready(outputs)

    refs = reference_forward(x, senders, receivers, edge_feat, params, GNN_STEPS)
    for got, ref in zip(outputs, refs):
        assert got.shape == (S, O), got.shape
        assert jnp.allclose(got, ref, atol=1e-4, rtol=1e-4), \
            float(jnp.max(jnp.abs(got - ref)))

    print("KERNEL_OK")
</pallas_src>

<mosaic_0001>
module attributes {stable_mosaic.version = 11 : i64} {
  func.func @_fused_sparse_mpnn_kernel(%arg0: memref<64x2xi32, #tpu.memory_space<vmem>>, %arg1: memref<1x32xi32, #tpu.memory_space<vmem>>, %arg2: memref<32x8xf32, #tpu.memory_space<vmem>>, %arg3: memref<32x8xf32, #tpu.memory_space<vmem>>, %arg4: memref<8x32xf32, #tpu.memory_space<vmem>>, %arg5: memref<8x32xf32, #tpu.memory_space<vmem>>, %arg6: memref<96x32xf32, #tpu.memory_space<vmem>>, %arg7: memref<32x16xf32, #tpu.memory_space<vmem>>, %arg8: memref<3x32xf32, #tpu.memory_space<vmem>>, %arg9: memref<16x16xf32, #tpu.memory_space<vmem>>) attributes {dimension_semantics = [], scalar_prefetch = 0 : i64, scratch_operands = 0 : i64, tpu.core_type = #tpu.core_type<tc>} {
    %c0 = arith.constant 0 : index
    %c0_0 = arith.constant 0 : index
    %0 = vector.load %arg8[%c0, %c0_0] : memref<3x32xf32, #tpu.memory_space<vmem>>, vector<3x32xf32>
    %1 = vector.extract_strided_slice %0 {offsets = [0, 0], sizes = [1, 32], strides = [1, 1]} : vector<3x32xf32> to vector<1x32xf32>
    %2 = vector.extract_strided_slice %0 {offsets = [1, 0], sizes = [1, 32], strides = [1, 1]} : vector<3x32xf32> to vector<1x32xf32>
    %3 = vector.extract_strided_slice %0 {offsets = [2, 0], sizes = [1, 16], strides = [1, 1]} : vector<3x32xf32> to vector<1x16xf32>
    %c0_1 = arith.constant 0 : index
    %c0_2 = arith.constant 0 : index
    %4 = vector.load %arg6[%c0_1, %c0_2] : memref<96x32xf32, #tpu.memory_space<vmem>>, vector<96x32xf32>
    %c0_3 = arith.constant 0 : index
    %c0_4 = arith.constant 0 : index
    %5 = vector.load %arg2[%c0_3, %c0_4] : memref<32x8xf32, #tpu.memory_space<vmem>>, vector<32x8xf32>
    %c0_5 = arith.constant 0 : index
    %c0_6 = arith.constant 0 : index
    %6 = vector.load %arg4[%c0_5, %c0_6] : memref<8x32xf32, #tpu.memory_space<vmem>>, vector<8x32xf32>
    %cst = arith.constant dense<0.000000e+00> : vector<32x32xf32>
    %7 = tpu.matmul %5, %6, %cst {dimension_numbers = #tpu.dot_dimension_numbers<[1], [0], [0], [1], [0, 0, 1, 1], [], []>} : vector<32x8xf32>, vector<8x32xf32>, vector<32x32xf32> -> vector<32x32xf32>
    %c0_7 = arith.constant 0 : index
    %c0_8 = arith.constant 0 : index
    %8 = vector.load %arg3[%c0_7, %c0_8] : memref<32x8xf32, #tpu.memory_space<vmem>>, vector<32x8xf32>
    %c0_9 = arith.constant 0 : index
    %c0_10 = arith.constant 0 : index
    %9 = vector.load %arg5[%c0_9, %c0_10] : memref<8x32xf32, #tpu.memory_space<vmem>>, vector<8x32xf32>
    %cst_11 = arith.constant dense<0.000000e+00> : vector<32x32xf32>
    %10 = tpu.matmul %8, %9, %cst_11 {dimension_numbers = #tpu.dot_dimension_numbers<[1], [0], [0], [1], [0, 0, 1, 1], [], []>} : vector<32x8xf32>, vector<8x32xf32>, vector<32x32xf32> -> vector<32x32xf32>
    %11 = vector.broadcast %1 : vector<1x32xf32> to vector<32x32xf32>
    %12 = arith.addf %10, %11 : vector<32x32xf32>
    %c0_12 = arith.constant 0 : index
    %c0_13 = arith.constant 0 : index
    %13 = vector.load %arg0[%c0_12, %c0_13] : memref<64x2xi32, #tpu.memory_space<vmem>>, vector<64x2xi32>
    %14 = vector.extract_strided_slice %13 {offsets = [0, 0], sizes = [64, 1], strides = [1, 1]} : vector<64x2xi32> to vector<64x1xi32>
    %15 = vector.extract_strided_slice %13 {offsets = [0, 1], sizes = [64, 1], strides = [1, 1]} : vector<64x2xi32> to vector<64x1xi32>
    %16 = tpu.iota {dimensions = array<i32: 1>} : vector<64x32xi32>
    %17 = vector.broadcast %14 : vector<64x1xi32> to vector<64x32xi32>
    %18 = arith.cmpi eq, %17, %16 : vector<64x32xi32>
    %19 = arith.extui %18 : vector<64x32xi1> to vector<64x32xi32>
    %20 = arith.sitofp %19 : vector<64x32xi32> to vector<64x32xf32>
    %21 = tpu.iota {dimensions = array<i32: 1>} : vector<64x8xi32>
    %22 = vector.broadcast %15 : vector<64x1xi32> to vector<64x8xi32>
    %23 = arith.cmpi eq, %22, %21 : vector<64x8xi32>
    %24 = arith.extui %23 : vector<64x8xi1> to vector<64x8xi32>
    %25 = arith.sitofp %24 : vector<64x8xi32> to vector<64x8xf32>
    %26 = tpu.iota {dimensions = array<i32: 0>} : vector<32x32xi32>
    %c0_14 = arith.constant 0 : index
    %c0_15 = arith.constant 0 : index
    %27 = vector.load %arg1[%c0_14, %c0_15] : memref<1x32xi32, #tpu.memory_space<vmem>>, vector<1x32xi32>
    %28 = vector.broadcast %27 : vector<1x32xi32> to vector<32x32xi32>
    %29 = arith.cmpi eq, %26, %28 : vector<32x32xi32>
    %30 = arith.extui %29 : vector<32x32xi1> to vector<32x32xi32>
    %31 = arith.sitofp %30 : vector<32x32xi32> to vector<32x32xf32>
    %cst_16 = arith.constant dense<0.000000e+00> : vector<64x32xf32>
    %32 = tpu.matmul %20, %7, %cst_16 {dimension_numbers = #tpu.dot_dimension_numbers<[1], [0], [0], [1], [0, 0, 1, 1], [], []>} : vector<64x32xf32>, vector<32x32xf32>, vector<64x32xf32> -> vector<64x32xf32>
    %33 = vector.extract_strided_slice %32 {offsets = [0, 0], sizes = [32, 32], strides = [1, 1]} : vector<64x32xf32> to vector<32x32xf32>
    %34 = vector.extract_strided_slice %32 {offsets = [32, 0], sizes = [32, 32], strides = [1, 1]} : vector<64x32xf32> to vector<32x32xf32>
    %35 = tpu.concatenate %33, %34, %12 in 1 : vector<32x32xf32>, vector<32x32xf32>, vector<32x32xf32> -> vector<32x96xf32>
    %cst_17 = arith.constant dense<0.000000e+00> : vector<32x32xf32>
    %36 = tpu.matmul %35, %4, %cst_17 {dimension_numbers = #tpu.dot_dimension_numbers<[1], [0], [0], [1], [0, 0, 1, 1], [], []>} : vector<32x96xf32>, vector<96x32xf32>, vector<32x32xf32> -> vector<32x32xf32>
    %37 = vector.broadcast %2 : vector<1x32xf32> to vector<32x32xf32>
    %38 = arith.addf %36, %37 : vector<32x32xf32>
    %cst_18 = arith.constant 0.000000e+00 : f32
    %39 = vector.broadcast %cst_18 : f32 to vector<32x32xf32>
    %40 = arith.maximumf %38, %39 : vector<32x32xf32>
    %cst_19 = arith.constant dense<0.000000e+00> : vector<32x32xf32>
    %41 = tpu.matmul %31, %40, %cst_19 {dimension_numbers = #tpu.dot_dimension_numbers<[1], [0], [0], [1], [0, 0, 1, 1], [], []>} : vector<32x32xf32>, vector<32x32xf32>, vector<32x32xf32> -> vector<32x32xf32>
    %42 = arith.addf %41, %7 : vector<32x32xf32>
    %43 = vector.extract_strided_slice %42 {offsets = [0, 0], sizes = [8, 32], strides = [1, 1]} : vector<32x32xf32> to vector<8x32xf32>
    %44 = vector.extract_strided_slice %42 {offsets = [8, 0], sizes = [8, 32], strides = [1, 1]} : vector<32x32xf32> to vector<8x32xf32>
    %45 = arith.maximumf %43, %44 : vector<8x32xf32>
    %46 = vector.extract_strided_slice %42 {offsets = [16, 0], sizes = [8, 32], strides = [1, 1]} : vector<32x32xf32> to vector<8x32xf32>
    %47 = arith.maximumf %45, %46 : vector<8x32xf32>
    %48 = vector.extract_strided_slice %42 {offsets = [24, 0], sizes = [8, 32], strides = [1, 1]} : vector<32x32xf32> to vector<8x32xf32>
    %49 = arith.maximumf %47, %48 : vector<8x32xf32>
    %cst_20 = arith.constant dense<0.000000e+00> : vector<64x32xf32>
    %50 = tpu.matmul %25, %49, %cst_20 {dimension_numbers = #tpu.dot_dimension_numbers<[1], [0], [0], [1], [0, 0, 1, 1], [], []>} : vector<64x8xf32>, vector<8x32xf32>, vector<64x32xf32> -> vector<64x32xf32>
    %51 = vector.extract_strided_slice %50 {offsets = [0, 0], sizes = [32, 32], strides = [1, 1]} : vector<64x32xf32> to vector<32x32xf32>
    %52 = vector.extract_strided_slice %50 {offsets = [32, 0], sizes = [32, 32], strides = [1, 1]} : vector<64x32xf32> to vector<32x32xf32>
    %53 = tpu.concatenate %51, %52 in 1 : vector<32x32xf32>, vector<32x32xf32> -> vector<32x64xf32>
    %54 = vector.extract_strided_slice %4 {offsets = [0, 0], sizes = [64, 32], strides = [1, 1]} : vector<96x32xf32> to vector<64x32xf32>
    %cst_21 = arith.constant dense<0.000000e+00> : vector<32x32xf32>
    %55 = tpu.matmul %53, %54, %cst_21 {dimension_numbers = #tpu.dot_dimension_numbers<[1], [0], [0], [1], [0, 0, 1, 1], [], []>} : vector<32x64xf32>, vector<64x32xf32>, vector<32x32xf32> -> vector<32x32xf32>
    %56 = arith.addf %38, %55 : vector<32x32xf32>
    %cst_22 = arith.constant 0.000000e+00 : f32
    %57 = vector.broadcast %cst_22 : f32 to vector<32x32xf32>
    %58 = arith.maximumf %56, %57 : vector<32x32xf32>
    %cst_23 = arith.constant dense<0.000000e+00> : vector<32x32xf32>
    %59 = tpu.matmul %31, %58, %cst_23 {dimension_numbers = #tpu.dot_dimension_numbers<[1], [0], [0], [1], [0, 0, 1, 1], [], []>} : vector<32x32xf32>, vector<32x32xf32>, vector<32x32xf32> -> vector<32x32xf32>
    %60 = arith.addf %59, %7 : vector<32x32xf32>
    %61 = vector.extract_strided_slice %60 {offsets = [0, 0], sizes = [8, 32], strides = [1, 1]} : vector<32x32xf32> to vector<8x32xf32>
    %62 = vector.extract_strided_slice %60 {offsets = [8, 0], sizes = [8, 32], strides = [1, 1]} : vector<32x32xf32> to vector<8x32xf32>
    %63 = arith.maximumf %61, %62 : vector<8x32xf32>
    %64 = vector.extract_strided_slice %60 {offsets = [16, 0], sizes = [8, 32], strides = [1, 1]} : vector<32x32xf32> to vector<8x32xf32>
    %65 = arith.maximumf %63, %64 : vector<8x32xf32>
    %66 = vector.extract_strided_slice %60 {offsets = [24, 0], sizes = [8, 32], strides = [1, 1]} : vector<32x32xf32> to vector<8x32xf32>
    %67 = arith.maximumf %65, %66 : vector<8x32xf32>
    %68 = arith.addf %67, %49 : vector<8x32xf32>
    %69 = tpu.concatenate %49, %68 in 0 : vector<8x32xf32>, vector<8x32xf32> -> vector<16x32xf32>
    %c0_24 = arith.constant 0 : index
    %c0_25 = arith.constant 0 : index
    %70 = vector.load %arg7[%c0_24, %c0_25] : memref<32x16xf32, #tpu.memory_space<vmem>>, vector<32x16xf32>
    %cst_26 = arith.constant dense<0.000000e+00> : vector<16x16xf32>
    %71 = tpu.matmul %69, %70, %cst_26 {dimension_numbers = #tpu.dot_dimension_numbers<[1], [0], [0], [1], [0, 0, 1, 1], [], []>} : vector<16x32xf32>, vector<32x16xf32>, vector<16x16xf32> -> vector<16x16xf32>
    %72 = vector.broadcast %3 : vector<1x16xf32> to vector<16x16xf32>
    %73 = arith.addf %71, %72 : vector<16x16xf32>
    %c0_27 = arith.constant 0 : index
    %c0_28 = arith.constant 0 : index
    %74 = vector.load %arg9[%c0_27, %c0_28] : memref<16x16xf32, #tpu.memory_space<vmem>>, vector<16x16xf32>
    tpu.vector_store %arg9[%c0_27, %c0_28], %73 {strides = array<i32>} : memref<16x16xf32, #tpu.memory_space<vmem>>, vector<16x16xf32>,
    return
  }
}

</mosaic_0001>

<llo_original>
// kernel: sparse_mpnn_forward.1
$region0: #{sparse_mpnn_forward.1}
  #allocation0 [shape = 'u32[]', space=smem, size = 0x4, offset = 0x4, fixed_abs, tag = 'smem constant byte address 0x4 - core index']
  #allocation1 [shape = 'u32[144,128]{1,0:T(1,128)}', space=vmem, size = 0x12000, scoped, tag = 'internal scratch']
  %s0 = inlined_call_operand.vmem [shape: s32[64,2], index: 0, kind: input, shape index: {}]
  %s1 = inlined_call_operand.vmem [shape: s32[1,32], index: 1, kind: input, shape index: {}]
  %s2 = inlined_call_operand.vmem [shape: f32[32,8], index: 2, kind: input, shape index: {}]
  %s3 = inlined_call_operand.vmem [shape: f32[32,8], index: 3, kind: input, shape index: {}]
  %s4 = inlined_call_operand.vmem [shape: f32[8,32], index: 4, kind: input, shape index: {}]
  %s5 = inlined_call_operand.vmem [shape: f32[8,32], index: 5, kind: input, shape index: {}]
  %s6 = inlined_call_operand.vmem [shape: f32[96,32], index: 6, kind: input, shape index: {}]
  %s7 = inlined_call_operand.vmem [shape: f32[32,16], index: 7, kind: input, shape index: {}]
  %s8 = inlined_call_operand.vmem [shape: f32[3,32], index: 8, kind: input, shape index: {}]
  %s9 = inlined_call_operand.vmem [shape: f32[16,16], index: 9, kind: output, shape index: {}]
  %s10 = sld [smem:[#allocation0]]
  $region46: #{sparse_mpnn_forward.1} parent=0
    _
  %s12 = ssub.s32 1, %s10
  %s13 = scalar_select 0, %s12, %s10
  // Predicated region
  $region2: #{sparse_mpnn_forward.1} parent=0 // pred_check
    _
  $region3: #{sparse_mpnn_forward.1} parent=0 // pred_check_branch
    %15 = sbr.rel (0) target = $region5
  $region4: #{sparse_mpnn_forward.1} parent=0 // pred_region
    _
  $region5: #{sparse_mpnn_forward.1} parent=0 // pred_fallthru
    _
  // Predicated region
  $region6: #{sparse_mpnn_forward.1} parent=0 // pred_check
    _
  $region7: #{sparse_mpnn_forward.1} parent=0 // pred_check_branch
    %17 = sbr.rel (0) target = $region9
  $region8: #{sparse_mpnn_forward.1} parent=0 // pred_region
    _
  $region9: #{sparse_mpnn_forward.1} parent=0 // pred_fallthru
    _
  // Predicated region
  $region10: #{sparse_mpnn_forward.1} parent=0 // pred_check
    _
  $region11: #{sparse_mpnn_forward.1} parent=0 // pred_check_branch
    %19 = sbr.rel (0) target = $region13
  $region12: #{sparse_mpnn_forward.1} parent=0 // pred_region
    _
  $region13: #{sparse_mpnn_forward.1} parent=0 // pred_fallthru
    _
  // Predicated region
  $region14: #{sparse_mpnn_forward.1} parent=0 // pred_check
    _
  $region15: #{sparse_mpnn_forward.1} parent=0 // pred_check_branch
    %21 = sbr.rel (0) target = $region17
  $region16: #{sparse_mpnn_forward.1} parent=0 // pred_region
    _
  $region17: #{sparse_mpnn_forward.1} parent=0 // pred_fallthru
    _
  // Predicated region
  $region18: #{sparse_mpnn_forward.1} parent=0 // pred_check
    _
  $region19: #{sparse_mpnn_forward.1} parent=0 // pred_check_branch
    %23 = sbr.rel (0) target = $region21
  $region20: #{sparse_mpnn_forward.1} parent=0 // pred_region
    _
  $region21: #{sparse_mpnn_forward.1} parent=0 // pred_fallthru
    _
  // Predicated region
  $region22: #{sparse_mpnn_forward.1} parent=0 // pred_check
    _
  $region23: #{sparse_mpnn_forward.1} parent=0 // pred_check_branch
    %25 = sbr.rel (0) target = $region25
  $region24: #{sparse_mpnn_forward.1} parent=0 // pred_region
    _
  $region25: #{sparse_mpnn_forward.1} parent=0 // pred_fallthru
    _
  // Predicated region
  $region26: #{sparse_mpnn_forward.1} parent=0 // pred_check
    _
  $region27: #{sparse_mpnn_forward.1} parent=0 // pred_check_branch
    %27 = sbr.rel (0) target = $region29
  $region28: #{sparse_mpnn_forward.1} parent=0 // pred_region
    _
  $region29: #{sparse_mpnn_forward.1} parent=0 // pred_fallthru
    _
  // Predicated region
  $region30: #{sparse_mpnn_forward.1} parent=0 // pred_check
    _
  $region31: #{sparse_mpnn_forward.1} parent=0 // pred_check_branch
    %29 = sbr.rel (0) target = $region33
  $region32: #{sparse_mpnn_forward.1} parent=0 // pred_region
    _
  $region33: #{sparse_mpnn_forward.1} parent=0 // pred_fallthru
    _
  // Predicated region
  $region34: #{sparse_mpnn_forward.1} parent=0 // pred_check
    _
  $region35: #{sparse_mpnn_forward.1} parent=0 // pred_check_branch
    %31 = sbr.rel (0) target = $region37
  $region36: #{sparse_mpnn_forward.1} parent=0 // pred_region
    _
  $region37: #{sparse_mpnn_forward.1} parent=0 // pred_fallthru
    _
  %v32 = vld [vmem:[%s8] sm:$0x7]
  %v33 = vld [vmem:[%s6] sm:$0xff]
  %v34 = vld [vmem:[%s6 + $0x8] sm:$0xff]
  %v35 = vld [vmem:[%s6 + $0x10] sm:$0xff]
  %v36 = vld [vmem:[%s6 + $0x18] sm:$0xff]
  %v37 = vld [vmem:[%s6 + $0x20] sm:$0xff]
  %v38 = vld [vmem:[%s6 + $0x28] sm:$0xff]
  %v39 = vld [vmem:[%s6 + $0x30] sm:$0xff]
  %v40 = vld [vmem:[%s6 + $0x38] sm:$0xff]
  %v41 = vld [vmem:[%s6 + $0x40] sm:$0xff]
  %v42 = vld [vmem:[%s6 + $0x48] sm:$0xff]
  %v43 = vld [vmem:[%s6 + $0x50] sm:$0xff]
  %v44 = vld [vmem:[%s6 + $0x58] sm:$0xff]
  %v45 = vld [vmem:[%s2] sm:$0xff]
  %v46 = vld [vmem:[%s2 + $0x8] sm:$0xff]
  %v47 = vld [vmem:[%s2 + $0x10] sm:$0xff]
  %v48 = vld [vmem:[%s2 + $0x18] sm:$0xff]
  %v49 = vld [vmem:[%s4] sm:$0xff]
  %vm50 = vcmask 64512
  %v52 = vsel %vm50, %v45, 0
  %v55 = vsel %vm50, %v46, 0
  %v58 = vsel %vm50, %v47, 0
  %v61 = vsel %vm50, %v48, 0
  %63 = vmatprep.subr.mxu0 0.0
  %64 = vmatpush1.msra.mxu0 %v49
  %65 = vmatprep.subr.mxu0 0.0
  %66 = vmatpush1.msra.mxu0 0.0
  %67 = vmatprep.subr.mxu0 0.0
  %68 = vmatpush1.msra.mxu0 0.0
  %69 = vmatprep.subr.mxu0 0.0
  %70 = vmatpush1.msra.mxu0 0.0
  %71 = vmatprep.subr.mxu0 0.0
  %72 = vmatpush1.msra.mxu0 0.0
  %73 = vmatprep.subr.mxu0 0.0
  %74 = vmatpush1.msra.mxu0 0.0
  %75 = vmatprep.subr.mxu0 0.0
  %76 = vmatpush1.msra.mxu0 0.0
  %77 = vmatprep.subr.mxu0 0.0
  %78 = vmatpush1.msra.mxu0 0.0
  %79 = vmatprep.subr.mxu0 0.0
  %80 = vmatpush1.msra.mxu0 0.0
  %81 = vmatprep.subr.mxu0 0.0
  %82 = vmatpush1.msra.mxu0 0.0
  %83 = vmatprep.subr.mxu0 0.0
  %84 = vmatpush1.msra.mxu0 0.0
  %85 = vmatprep.subr.mxu0 0.0
  %86 = vmatpush1.msra.mxu0 0.0
  %87 = vmatprep.subr.mxu0 0.0
  %88 = vmatpush1.msra.mxu0 0.0
  %89 = vmatprep.subr.mxu0 0.0
  %90 = vmatpush1.msra.mxu0 0.0
  %91 = vmatprep.subr.mxu0 0.0
  %92 = vmatpush1.msra.mxu0 0.0
  %93 = vmatprep.subr.mxu0 0.0
  %94 = vmatpush1.msra.mxu0 0.0
  %95 = vmatprep.subr.mxu0 0.0
  %96 = vmatpush1.msra.mxu0 0.0
  %97 = vmatprep.subr.mxu0 0.0
  %98 = vmatpush1.msra.mxu0 0.0
  %99 = vmatprep.subr.mxu0 0.0
  %100 = vmatpush1.msra.mxu0 0.0
  %101 = vmatprep.subr.mxu0 0.0
  %102 = vmatpush1.msra.mxu0 0.0
  %103 = vmatprep.subr.mxu0 0.0
  %104 = vmatpush1.msra.mxu0 0.0
  %105 = vmatprep.subr.mxu0 0.0
  %106 = vmatpush1.msra.mxu0 0.0
  %107 = vmatprep.subr.mxu0 0.0
  %108 = vmatpush1.msra.mxu0 0.0
  %109 = vmatprep.subr.mxu0 0.0
  %110 = vmatpush1.msra.mxu0 0.0
  %111 = vmatprep.subr.mxu0 0.0
  %112 = vmatpush1.msra.mxu0 0.0
  %113 = vmatprep.subr.mxu0 0.0
  %114 = vmatpush1.msra.mxu0 0.0
  %115 = vmatprep.subr.mxu0 0.0
  %116 = vmatpush1.msra.mxu0 0.0
  %117 = vmatprep.subr.mxu0 0.0
  %118 = vmatpush1.msra.mxu0 0.0
  %119 = vmatprep.subr.mxu0 0.0
  %120 = vmatpush1.msra.mxu0 0.0
  %121 = vmatprep.subr.mxu0 0.0
  %122 = vmatpush1.msra.mxu0 0.0
  %123 = vmatprep.subr.mxu0 0.0
  %124 = vmatpush1.msra.mxu0 0.0
  %125 = vmatprep.subr.mxu0 0.0
  %126 = vmatpush1.msra.mxu0 0.0
  %127 = vmatprep.mubr.f32.mxu0 0.0
  %128 = vmatmul.mubr.f32.gmra.mrb[0].mxu0 %v52
  %v129 = vpop.f32.mrb[0].mxu0
  %v130 = vadd.f32 0.0, %v129
  %v131 = vpop.f32.mrb[0].mxu0
  %132 = vmatprep.mubr.f32.mxu0 0.0
  %133 = vmatmul.mubr.f32.gmra.mrb[0].mxu0 %v55
  %v134 = vpop.f32.mrb[0].mxu0
  %v135 = vadd.f32 0.0, %v134
  %v136 = vpop.f32.mrb[0].mxu0
  %137 = vmatprep.mubr.f32.mxu0 0.0
  %138 = vmatmul.mubr.f32.gmra.mrb[0].mxu0 %v58
  %v139 = vpop.f32.mrb[0].mxu0
  %v140 = vadd.f32 0.0, %v139
  %v141 = vpop.f32.mrb[0].mxu0
  %142 = vmatprep.mubr.f32.mxu0 0.0
  %143 = vmatmul.mubr.f32.gmra.mrb[0].mxu0 %v61
  %v144 = vpop.f32.mrb[0].mxu0
  %v145 = vadd.f32 0.0, %v144
  %v146 = vpop.f32.mrb[0].mxu0
  %147 = vdwg.mxu0
  %v148 = vld [vmem:[%s3] sm:$0xff]
  %v149 = vld [vmem:[%s3 + $0x8] sm:$0xff]
  %v150 = vld [vmem:[%s3 + $0x10] sm:$0xff]
  %v151 = vld [vmem:[%s3 + $0x18] sm:$0xff]
  %v152 = vld [vmem:[%s5] sm:$0xff]
  %v153 = vlaneseq
  %v154 = vshrl.u32 %v153, 7
  %v155 = vsub.s32 0, %v154
  %v156 = vrot.slane %v32, %v155
  %v158 = vsel %vm50, %v148, 0
  %v161 = vsel %vm50, %v149, 0
  %v164 = vsel %vm50, %v150, 0
  %v167 = vsel %vm50, %v151, 0
  %169 = vmatprep.subr.mxu0 0.0
  %170 = vmatpush1.msra.mxu0 %v152
  %171 = vmatprep.subr.mxu0 0.0
  %172 = vmatpush1.msra.mxu0 0.0
  %173 = vmatprep.subr.mxu0 0.0
  %174 = vmatpush1.msra.mxu0 0.0
  %175 = vmatprep.subr.mxu0 0.0
  %176 = vmatpush1.msra.mxu0 0.0
  %177 = vmatprep.subr.mxu0 0.0
  %178 = vmatpush1.msra.mxu0 0.0
  %179 = vmatprep.subr.mxu0 0.0
  %180 = vmatpush1.msra.mxu0 0.0
  %181 = vmatprep.subr.mxu0 0.0
  %182 = vmatpush1.msra.mxu0 0.0
  %183 = vmatprep.subr.mxu0 0.0
  %184 = vmatpush1.msra.mxu0 0.0
  %185 = vmatprep.subr.mxu0 0.0
  %186 = vmatpush1.msra.mxu0 0.0
  %187 = vmatprep.subr.mxu0 0.0
  %188 = vmatpush1.msra.mxu0 0.0
  %189 = vmatprep.subr.mxu0 0.0
  %190 = vmatpush1.msra.mxu0 0.0
  %191 = vmatprep.subr.mxu0 0.0
  %192 = vmatpush1.msra.mxu0 0.0
  %193 = vmatprep.subr.mxu0 0.0
  %194 = vmatpush1.msra.mxu0 0.0
  %195 = vmatprep.subr.mxu0 0.0
  %196 = vmatpush1.msra.mxu0 0.0
  %197 = vmatprep.subr.mxu0 0.0
  %198 = vmatpush1.msra.mxu0 0.0
  %199 = vmatprep.subr.mxu0 0.0
  %200 = vmatpush1.msra.mxu0 0.0
  %201 = vmatprep.subr.mxu0 0.0
  %202 = vmatpush1.msra.mxu0 0.0
  %203 = vmatprep.subr.mxu0 0.0
  %204 = vmatpush1.msra.mxu0 0.0
  %205 = vmatprep.subr.mxu0 0.0
  %206 = vmatpush1.msra.mxu0 0.0
  %207 = vmatprep.subr.mxu0 0.0
  %208 = vmatpush1.msra.mxu0 0.0
  %209 = vmatprep.subr.mxu0 0.0
  %210 = vmatpush1.msra.mxu0 0.0
  %211 = vmatprep.subr.mxu0 0.0
  %212 = vmatpush1.msra.mxu0 0.0
  %213 = vmatprep.subr.mxu0 0.0
  %214 = vmatpush1.msra.mxu0 0.0
  %215 = vmatprep.subr.mxu0 0.0
  %216 = vmatpush1.msra.mxu0 0.0
  %217 = vmatprep.subr.mxu0 0.0
  %218 = vmatpush1.msra.mxu0 0.0
  %219 = vmatprep.subr.mxu0 0.0
  %220 = vmatpush1.msra.mxu0 0.0
  %221 = vmatprep.subr.mxu0 0.0
  %222 = vmatpush1.msra.mxu0 0.0
  %223 = vmatprep.subr.mxu0 0.0
  %224 = vmatpush1.msra.mxu0 0.0
  %225 = vmatprep.subr.mxu0 0.0
  %226 = vmatpush1.msra.mxu0 0.0
  %227 = vmatprep.subr.mxu0 0.0
  %228 = vmatpush1.msra.mxu0 0.0
  %229 = vmatprep.subr.mxu0 0.0
  %230 = vmatpush1.msra.mxu0 0.0
  %231 = vmatprep.subr.mxu0 0.0
  %232 = vmatpush1.msra.mxu0 0.0
  %233 = vmatprep.mubr.f32.mxu0 0.0
  %234 = vmatmul.mubr.f32.gmra.mrb[0].mxu0 %v158
  %v235 = vpop.f32.mrb[0].mxu0
  %v236 = vadd.f32 %v156, %v235
  %v237 = vpop.f32.mrb[0].mxu0
  %238 = vmatprep.mubr.f32.mxu0 0.0
  %239 = vmatmul.mubr.f32.gmra.mrb[0].mxu0 %v161
  %v240 = vpop.f32.mrb[0].mxu0
  %v241 = vadd.f32 %v156, %v240
  %v242 = vpop.f32.mrb[0].mxu0
  %243 = vmatprep.mubr.f32.mxu0 0.0
  %244 = vmatmul.mubr.f32.gmra.mrb[0].mxu0 %v164
  %v245 = vpop.f32.mrb[0].mxu0
  %v246 = vadd.f32 %v156, %v245
  %v247 = vpop.f32.mrb[0].mxu0
  %248 = vmatprep.mubr.f32.mxu0 0.0
  %249 = vmatmul.mubr.f32.gmra.mrb[0].mxu0 %v167
  %v250 = vpop.f32.mrb[0].mxu0
  %v251 = vadd.f32 %v156, %v250
  %v252 = vpop.f32.mrb[0].mxu0
  %253 = vdwg.mxu0
  %v254 = vld [vmem:[%s0] sm:$0xff]
  %v255 = vld [vmem:[%s0 + $0x8] sm:$0xff]
  %v256 = vld [vmem:[%s0 + $0x10] sm:$0xff]
  %v257 = vld [vmem:[%s0 + $0x18] sm:$0xff]
  %v258 = vld [vmem:[%s0 + $0x20] sm:$0xff]
  %v259 = vld [vmem:[%s0 + $0x28] sm:$0xff]
  %v260 = vld [vmem:[%s0 + $0x30] sm:$0xff]
  %v261 = vld [vmem:[%s0 + $0x38] sm:$0xff]
  %v262 = vlaneseq
  %v263 = vand.u32 %v262, 127
  %264 = vset.pattern.permute.xlu0 0
  %265 = vperm.xlu0 %264, %v254
  %v266 = vpop.permute.xlu0 %265
  %267 = vset.pattern.permute.xlu0 0
  %268 = vperm.xlu0 %267, %v255
  %v269 = vpop.permute.xlu0 %268
  %270 = vset.pattern.permute.xlu0 0
  %271 = vperm.xlu0 %270, %v256
  %v272 = vpop.permute.xlu0 %271
  %273 = vset.pattern.permute.xlu0 0
  %274 = vperm.xlu0 %273, %v257
  %v275 = vpop.permute.xlu0 %274
  %276 = vset.pattern.permute.xlu0 0
  %277 = vperm.xlu0 %276, %v258
  %v278 = vpop.permute.xlu0 %277
  %279 = vset.pattern.permute.xlu0 0
  %280 = vperm.xlu0 %279, %v259
  %v281 = vpop.permute.xlu0 %280
  %282 = vset.pattern.permute.xlu0 0
  %283 = vperm.xlu0 %282, %v260
  %v284 = vpop.permute.xlu0 %283
  %285 = vset.pattern.permute.xlu0 0
  %286 = vperm.xlu0 %285, %v261
  %v287 = vpop.permute.xlu0 %286
  %vm288 = vcmp.eq.s32.totalorder %v266, %v263
  %vm289 = vcmp.eq.s32.totalorder %v269, %v263
  %vm290 = vcmp.eq.s32.totalorder %v272, %v263
  %vm291 = vcmp.eq.s32.totalorder %v275, %v263
  %vm292 = vcmp.eq.s32.totalorder %v278, %v263
  %vm293 = vcmp.eq.s32.totalorder %v281, %v263
  %vm294 = vcmp.eq.s32.totalorder %v284, %v263
  %vm295 = vcmp.eq.s32.totalorder %v287, %v263
  %v296 = vsel %vm288, 1, 0
  %v297 = vsel %vm289, 1, 0
  %v298 = vsel %vm290, 1, 0
  %v299 = vsel %vm291, 1, 0
  %v300 = vsel %vm292, 1, 0
  %v301 = vsel %vm293, 1, 0
  %v302 = vsel %vm294, 1, 0
  %v303 = vsel %vm295, 1, 0
  %v304 = vcvt.s32.f32 %v296
  %v305 = vcvt.s32.f32 %v297
  %v306 = vcvt.s32.f32 %v298
  %v307 = vcvt.s32.f32 %v299
  %v308 = vcvt.s32.f32 %v300
  %v309 = vcvt.s32.f32 %v301
  %v310 = vcvt.s32.f32 %v302
  %v311 = vcvt.s32.f32 %v303
  %312 = vset.pattern.permute.xlu0 1
  %313 = vperm.xlu0 %312, %v254
  %v314 = vpop.permute.xlu0 %313
  %315 = vset.pattern.permute.xlu0 1
  %316 = vperm.xlu0 %315, %v255
  %v317 = vpop.permute.xlu0 %316
  %318 = vset.pattern.permute.xlu0 1
  %319 = vperm.xlu0 %318, %v256
  %v320 = vpop.permute.xlu0 %319
  %321 = vset.pattern.permute.xlu0 1
  %322 = vperm.xlu0 %321, %v257
  %v323 = vpop.permute.xlu0 %322
  %324 = vset.pattern.permute.xlu0 1
  %325 = vperm.xlu0 %324, %v258
  %v326 = vpop.permute.xlu0 %325
  %327 = vset.pattern.permute.xlu0 1
  %328 = vperm.xlu0 %327, %v259
  %v329 = vpop.permute.xlu0 %328
  %330 = vset.pattern.permute.xlu0 1
  %331 = vperm.xlu0 %330, %v260
  %v332 = vpop.permute.xlu0 %331
  %333 = vset.pattern.permute.xlu0 1
  %334 = vperm.xlu0 %333, %v261
  %v335 = vpop.permute.xlu0 %334
  %vm336 = vcmp.eq.s32.totalorder %v314, %v263
  %vm337 = vcmp.eq.s32.totalorder %v317, %v263
  %vm338 = vcmp.eq.s32.totalorder %v320, %v263
  %vm339 = vcmp.eq.s32.totalorder %v323, %v263
  %vm340 = vcmp.eq.s32.totalorder %v326, %v263
  %vm341 = vcmp.eq.s32.totalorder %v329, %v263
  %vm342 = vcmp.eq.s32.totalorder %v332, %v263
  %vm343 = vcmp.eq.s32.totalorder %v335, %v263
  %v344 = vsel %vm336, 1, 0
  %v345 = vsel %vm337, 1, 0
  %v346 = vsel %vm338, 1, 0
  %v347 = vsel %vm339, 1, 0
  %v348 = vsel %vm340, 1, 0
  %v349 = vsel %vm341, 1, 0
  %v350 = vsel %vm342, 1, 0
  %v351 = vsel %vm343, 1, 0
  %v352 = vcvt.s32.f32 %v344
  %v353 = vcvt.s32.f32 %v345
  %v354 = vcvt.s32.f32 %v346
  %v355 = vcvt.s32.f32 %v347
  %v356 = vcvt.s32.f32 %v348
  %v357 = vcvt.s32.f32 %v349
  %v358 = vcvt.s32.f32 %v350
  %v359 = vcvt.s32.f32 %v351
  %v360 = vlaneseq
  %v361 = vshrl.u32 %v360, 7
  %v362 = vadd.s32 %v361, 8
  %v363 = vadd.s32 %v361, 16
  %v364 = vadd.s32 %v361, 24
  %v365 = vld [vmem:[%s1] sm:$0x1]
  %v366 = vlaneseq
  %v367 = vshrl.u32 %v366, 7
  %v368 = vsub.s32 0, %v367
  %v369 = vrot.slane %v365, %v368
  %vm370 = vcmp.eq.s32.totalorder %v361, %v369
  %vm371 = vcmp.eq.s32.totalorder %v362, %v369
  %vm372 = vcmp.eq.s32.totalorder %v363, %v369
  %vm373 = vcmp.eq.s32.totalorder %v364, %v369
  %v374 = vsel %vm370, 1, 0
  %v375 = vsel %vm371, 1, 0
  %v376 = vsel %vm372, 1, 0
  %v377 = vsel %vm373, 1, 0
  %v378 = vcvt.s32.f32 %v374
  %v379 = vcvt.s32.f32 %v375
  %v380 = vcvt.s32.f32 %v376
  %v381 = vcvt.s32.f32 %v377
  %vm382 = vcmask 261120
  %v384 = vsel %vm382, %v304, 0
  %v387 = vsel %vm382, %v305, 0
  %v390 = vsel %vm382, %v306, 0
  %v393 = vsel %vm382, %v307, 0
  %v396 = vsel %vm382, %v308, 0
  %v399 = vsel %vm382, %v309, 0
  %v402 = vsel %vm382, %v310, 0
  %v405 = vsel %vm382, %v311, 0
  %407 = vmatprep.subr.mxu0 0.0
  %408 = vmatpush1.msra.mxu0 %v130
  %409 = vmatprep.subr.mxu0 0.0
  %410 = vmatpush1.msra.mxu0 %v135
  %411 = vmatprep.subr.mxu0 0.0
  %412 = vmatpush1.msra.mxu0 %v140
  %413 = vmatprep.subr.mxu0 0.0
  %414 = vmatpush1.msra.mxu0 %v145
  %415 = vmatprep.subr.mxu0 0.0
  %416 = vmatpush1.msra.mxu0 0.0
  %417 = vmatprep.subr.mxu0 0.0
  %418 = vmatpush1.msra.mxu0 0.0
  %419 = vmatprep.subr.mxu0 0.0
  %420 = vmatpush1.msra.mxu0 0.0
  %421 = vmatprep.subr.mxu0 0.0
  %422 = vmatpush1.msra.mxu0 0.0
  %423 = vmatprep.subr.mxu0 0.0
  %424 = vmatpush1.msra.mxu0 0.0
  %425 = vmatprep.subr.mxu0 0.0
  %426 = vmatpush1.msra.mxu0 0.0
  %427 = vmatprep.subr.mxu0 0.0
  %428 = vmatpush1.msra.mxu0 0.0
  %429 = vmatprep.subr.mxu0 0.0
  %430 = vmatpush1.msra.mxu0 0.0
  %431 = vmatprep.subr.mxu0 0.0
  %432 = vmatpush1.msra.mxu0 0.0
  %433 = vmatprep.subr.mxu0 0.0
  %434 = vmatpush1.msra.mxu0 0.0
  %435 = vmatprep.subr.mxu0 0.0
  %436 = vmatpush1.msra.mxu0 0.0
  %437 = vmatprep.subr.mxu0 0.0
  %438 = vmatpush1.msra.mxu0 0.0
  %439 = vmatprep.subr.mxu0 0.0
  %440 = vmatpush1.msra.mxu0 0.0
  %441 = vmatprep.subr.mxu0 0.0
  %442 = vmatpush1.msra.mxu0 0.0
  %443 = vmatprep.subr.mxu0 0.0
  %444 = vmatpush1.msra.mxu0 0.0
  %445 = vmatprep.subr.mxu0 0.0
  %446 = vmatpush1.msra.mxu0 0.0
  %447 = vmatprep.subr.mxu0 0.0
  %448 = vmatpush1.msra.mxu0 0.0
  %449 = vmatprep.subr.mxu0 0.0
  %450 = vmatpush1.msra.mxu0 0.0
  %451 = vmatprep.subr.mxu0 0.0
  %452 = vmatpush1.msra.mxu0 0.0
  %453 = vmatprep.subr.mxu0 0.0
  %454 = vmatpush1.msra.mxu0 0.0
  %455 = vmatprep.subr.mxu0 0.0
  %456 = vmatpush1.msra.mxu0 0.0
  %457 = vmatprep.subr.mxu0 0.0
  %458 = vmatpush1.msra.mxu0 0.0
  %459 = vmatprep.subr.mxu0 0.0
  %460 = vmatpush1.msra.mxu0 0.0
  %461 = vmatprep.subr.mxu0 0.0
  %462 = vmatpush1.msra.mxu0 0.0
  %463 = vmatprep.subr.mxu0 0.0
  %464 = vmatpush1.msra.mxu0 0.0
  %465 = vmatprep.subr.mxu0 0.0
  %466 = vmatpush1.msra.mxu0 0.0
  %467 = vmatprep.subr.mxu0 0.0
  %468 = vmatpush1.msra.mxu0 0.0
  %469 = vmatprep.subr.mxu0 0.0
  %470 = vmatpush1.msra.mxu0 0.0
  %471 = vmatprep.mubr.f32.mxu0 0.0
  %472 = vmatmul.mubr.f32.gmra.mrb[0].mxu0 %v384
  %v473 = vpop.f32.mrb[0].mxu0
  %v474 = vadd.f32 0.0, %v473
  %v475 = vpop.f32.mrb[0].mxu0
  %476 = vmatprep.mubr.f32.mxu0 0.0
  %477 = vmatmul.mubr.f32.gmra.mrb[0].mxu0 %v387
  %v478 = vpop.f32.mrb[0].mxu0
  %v479 = vadd.f32 0.0, %v478
  %v480 = vpop.f32.mrb[0].mxu0
  %481 = vmatprep.mubr.f32.mxu0 0.0
  %482 = vmatmul.mubr.f32.gmra.mrb[0].mxu0 %v390
  %v483 = vpop.f32.mrb[0].mxu0
  %v484 = vadd.f32 0.0, %v483
  %v485 = vpop.f32.mrb[0].mxu0
  %486 = vmatprep.mubr.f32.mxu0 0.0
  %487 = vmatmul.mubr.f32.gmra.mrb[0].mxu0 %v393
  %v488 = vpop.f32.mrb[0].mxu0
  %v489 = vadd.f32 0.0, %v488
  %v490 = vpop.f32.mrb[0].mxu0
  %491 = vmatprep.mubr.f32.mxu0 0.0
  %492 = vmatmul.mubr.f32.gmra.mrb[0].mxu0 %v396
  %v493 = vpop.f32.mrb[0].mxu0
  %v494 = vadd.f32 0.0, %v493
  %v495 = vpop.f32.mrb[0].mxu0
  %496 = vmatprep.mubr.f32.mxu0 0.0
  %497 = vmatmul.mubr.f32.gmra.mrb[0].mxu0 %v399
  %v498 = vpop.f32.mrb[0].mxu0
  %v499 = vadd.f32 0.0, %v498
  %v500 = vpop.f32.mrb[0].mxu0
  %501 = vmatprep.mubr.f32.mxu0 0.0
  %502 = vmatmul.mubr.f32.gmra.mrb[0].mxu0 %v402
  %v503 = vpop.f32.mrb[0].mxu0
  %v504 = vadd.f32 0.0, %v503
  %v505 = vpop.f32.mrb[0].mxu0
  %506 = vmatprep.mubr.f32.mxu0 0.0
  %507 = vmatmul.mubr.f32.gmra.mrb[0].mxu0 %v405
  %v508 = vpop.f32.mrb[0].mxu0
  %v509 = vadd.f32 0.0, %v508
  %v510 = vpop.f32.mrb[0].mxu0
  %511 = vdwg.mxu0
  %516 = vrot.lane.b32.xlu0 %v494, 32
  %v517 = vpop.permute.xlu0 %516
  %518 = vrot.lane.b32.xlu0 %v499, 32
  %v519 = vpop.permute.xlu0 %518
  %520 = vrot.lane.b32.xlu0 %v504, 32
  %v521 = vpop.permute.xlu0 %520
  %522 = vrot.lane.b32.xlu0 %v509, 32
  %v523 = vpop.permute.xlu0 %522
  %532 = vrot.lane.b32.xlu0 %v236, 64
  %v533 = vpop.permute.xlu0 %532
  %534 = vrot.lane.b32.xlu0 %v241, 64
  %v535 = vpop.permute.xlu0 %534
  %536 = vrot.lane.b32.xlu0 %v246, 64
  %v537 = vpop.permute.xlu0 %536
  %538 = vrot.lane.b32.xlu0 %v251, 64
  %v539 = vpop.permute.xlu0 %538
  %v544 = vsel %vm382, %v474, %v517
  %v545 = vsel %vm382, %v479, %v519
  %v546 = vsel %vm382, %v484, %v521
  %v547 = vsel %vm382, %v489, %v523
  %vm548 = vcmask 523264
  %v549 = vsel %vm548, %v544, %v533
  %v550 = vsel %vm548, %v545, %v535
  %v551 = vsel %vm548, %v546, %v537
  %v552 = vsel %vm548, %v547, %v539
  %v553 = vlaneseq
  %v554 = vshrl.u32 %v553, 7
  %v555 = vsub.s32 1, %v554
  %v556 = vrot.slane %v32, %v555
  %vm557 = vcmask 785408
  %v559 = vsel %vm557, %v549, 0
  %v562 = vsel %vm557, %v550, 0
  %v565 = vsel %vm557, %v551, 0
  %v568 = vsel %vm557, %v552, 0
  %570 = vmatprep.subr.mxu0 0.0
  %571 = vmatpush1.msra.mxu0 %v33
  %572 = vmatprep.subr.mxu0 0.0
  %573 = vmatpush1.msra.mxu0 %v34
  %574 = vmatprep.subr.mxu0 0.0
  %575 = vmatpush1.msra.mxu0 %v35
  %576 = vmatprep.subr.mxu0 0.0
  %577 = vmatpush1.msra.mxu0 %v36
  %578 = vmatprep.subr.mxu0 0.0
  %579 = vmatpush1.msra.mxu0 %v37
  %580 = vmatprep.subr.mxu0 0.0
  %581 = vmatpush1.msra.mxu0 %v38
  %582 = vmatprep.subr.mxu0 0.0
  %583 = vmatpush1.msra.mxu0 %v39
  %584 = vmatprep.subr.mxu0 0.0
  %585 = vmatpush1.msra.mxu0 %v40
  %586 = vmatprep.subr.mxu0 0.0
  %587 = vmatpush1.msra.mxu0 %v41
  %588 = vmatprep.subr.mxu0 0.0
  %589 = vmatpush1.msra.mxu0 %v42
  %590 = vmatprep.subr.mxu0 0.0
  %591 = vmatpush1.msra.mxu0 %v43
  %592 = vmatprep.subr.mxu0 0.0
  %593 = vmatpush1.msra.mxu0 %v44
  %594 = vmatprep.subr.mxu0 0.0
  %595 = vmatpush1.msra.mxu0 0.0
  %596 = vmatprep.subr.mxu0 0.0
  %597 = vmatpush1.msra.mxu0 0.0
  %598 = vmatprep.subr.mxu0 0.0
  %599 = vmatpush1.msra.mxu0 0.0
  %600 = vmatprep.subr.mxu0 0.0
  %601 = vmatpush1.msra.mxu0 0.0
  %602 = vmatprep.subr.mxu0 0.0
  %603 = vmatpush1.msra.mxu0 0.0
  %604 = vmatprep.subr.mxu0 0.0
  %605 = vmatpush1.msra.mxu0 0.0
  %606 = vmatprep.subr.mxu0 0.0
  %607 = vmatpush1.msra.mxu0 0.0
  %608 = vmatprep.subr.mxu0 0.0
  %609 = vmatpush1.msra.mxu0 0.0
  %610 = vmatprep.subr.mxu0 0.0
  %611 = vmatpush1.msra.mxu0 0.0
  %612 = vmatprep.subr.mxu0 0.0
  %613 = vmatpush1.msra.mxu0 0.0
  %614 = vmatprep.subr.mxu0 0.0
  %615 = vmatpush1.msra.mxu0 0.0
  %616 = vmatprep.subr.mxu0 0.0
  %617 = vmatpush1.msra.mxu0 0.0
  %618 = vmatprep.subr.mxu0 0.0
  %619 = vmatpush1.msra.mxu0 0.0
  %620 = vmatprep.subr.mxu0 0.0
  %621 = vmatpush1.msra.mxu0 0.0
  %622 = vmatprep.subr.mxu0 0.0
  %623 = vmatpush1.msra.mxu0 0.0
  %624 = vmatprep.subr.mxu0 0.0
  %625 = vmatpush1.msra.mxu0 0.0
  %626 = vmatprep.subr.mxu0 0.0
  %627 = vmatpush1.msra.mxu0 0.0
  %628 = vmatprep.subr.mxu0 0.0
  %629 = vmatpush1.msra.mxu0 0.0
  %630 = vmatprep.subr.mxu0 0.0
  %631 = vmatpush1.msra.mxu0 0.0
  %632 = vmatprep.subr.mxu0 0.0
  %633 = vmatpush1.msra.mxu0 0.0
  %634 = vmatprep.mubr.f32.mxu0 0.0
  %635 = vmatmul.mubr.f32.gmra.mrb[0].mxu0 %v559
  %v636 = vpop.f32.mrb[0].mxu0
  %v637 = vadd.f32 %v556, %v636
  %v638 = vpop.f32.mrb[0].mxu0
  %639 = vmatprep.mubr.f32.mxu0 0.0
  %640 = vmatmul.mubr.f32.gmra.mrb[0].mxu0 %v562
  %v641 = vpop.f32.mrb[0].mxu0
  %v642 = vadd.f32 %v556, %v641
  %v643 = vpop.f32.mrb[0].mxu0
  %644 = vmatprep.mubr.f32.mxu0 0.0
  %645 = vmatmul.mubr.f32.gmra.mrb[0].mxu0 %v565
  %v646 = vpop.f32.mrb[0].mxu0
  %v647 = vadd.f32 %v556, %v646
  %v648 = vpop.f32.mrb[0].mxu0
  %649 = vmatprep.mubr.f32.mxu0 0.0
  %650 = vmatmul.mubr.f32.gmra.mrb[0].mxu0 %v568
  %v651 = vpop.f32.mrb[0].mxu0
  %v652 = vadd.f32 %v556, %v651
  %v653 = vpop.f32.mrb[0].mxu0
  %654 = vdwg.mxu0
  %v655 = vmax.f32 %v637, 0.0
  %v656 = vmax.f32 %v642, 0.0
  %v657 = vmax.f32 %v647, 0.0
  %v658 = vmax.f32 %v652, 0.0
  %v660 = vsel %vm382, %v378, 0
  %v663 = vsel %vm382, %v379, 0
  %v666 = vsel %vm382, %v380, 0
  %v669 = vsel %vm382, %v381, 0
  %671 = vmatprep.subr.mxu0 0.0
  %672 = vmatpush1.msra.mxu0 %v655
  %673 = vmatprep.subr.mxu0 0.0
  %674 = vmatpush1.msra.mxu0 %v656
  %675 = vmatprep.subr.mxu0 0.0
  %676 = vmatpush1.msra.mxu0 %v657
  %677 = vmatprep.subr.mxu0 0.0
  %678 = vmatpush1.msra.mxu0 %v658
  %679 = vmatprep.subr.mxu0 0.0
  %680 = vmatpush1.msra.mxu0 0.0
  %681 = vmatprep.subr.mxu0 0.0
  %682 = vmatpush1.msra.mxu0 0.0
  %683 = vmatprep.subr.mxu0 0.0
  %684 = vmatpush1.msra.mxu0 0.0
  %685 = vmatprep.subr.mxu0 0.0
  %686 = vmatpush1.msra.mxu0 0.0
  %687 = vmatprep.subr.mxu0 0.0
  %688 = vmatpush1.msra.mxu0 0.0
  %689 = vmatprep.subr.mxu0 0.0
  %690 = vmatpush1.msra.mxu0 0.0
  %691 = vmatprep.subr.mxu0 0.0
  %692 = vmatpush1.msra.mxu0 0.0
  %693 = vmatprep.subr.mxu0 0.0
  %694 = vmatpush1.msra.mxu0 0.0
  %695 = vmatprep.subr.mxu0 0.0
  %696 = vmatpush1.msra.mxu0 0.0
  %697 = vmatprep.subr.mxu0 0.0
  %698 = vmatpush1.msra.mxu0 0.0
  %699 = vmatprep.subr.mxu0 0.0
  %700 = vmatpush1.msra.mxu0 0.0
  %701 = vmatprep.subr.mxu0 0.0
  %702 = vmatpush1.msra.mxu0 0.0
  %703 = vmatprep.subr.mxu0 0.0
  %704 = vmatpush1.msra.mxu0 0.0
  %705 = vmatprep.subr.mxu0 0.0
  %706 = vmatpush1.msra.mxu0 0.0
  %707 = vmatprep.subr.mxu0 0.0
  %708 = vmatpush1.msra.mxu0 0.0
  %709 = vmatprep.subr.mxu0 0.0
  %710 = vmatpush1.msra.mxu0 0.0
  %711 = vmatprep.subr.mxu0 0.0
  %712 = vmatpush1.msra.mxu0 0.0
  %713 = vmatprep.subr.mxu0 0.0
  %714 = vmatpush1.msra.mxu0 0.0
  %715 = vmatprep.subr.mxu0 0.0
  %716 = vmatpush1.msra.mxu0 0.0
  %717 = vmatprep.subr.mxu0 0.0
  %718 = vmatpush1.msra.mxu0 0.0
  %719 = vmatprep.subr.mxu0 0.0
  %720 = vmatpush1.msra.mxu0 0.0
  %721 = vmatprep.subr.mxu0 0.0
  %722 = vmatpush1.msra.mxu0 0.0
  %723 = vmatprep.subr.mxu0 0.0
  %724 = vmatpush1.msra.mxu0 0.0
  %725 = vmatprep.subr.mxu0 0.0
  %726 = vmatpush1.msra.mxu0 0.0
  %727 = vmatprep.subr.mxu0 0.0
  %728 = vmatpush1.msra.mxu0 0.0
  %729 = vmatprep.subr.mxu0 0.0
  %730 = vmatpush1.msra.mxu0 0.0
  %731 = vmatprep.subr.mxu0 0.0
  %732 = vmatpush1.msra.mxu0 0.0
  %733 = vmatprep.subr.mxu0 0.0
  %734 = vmatpush1.msra.mxu0 0.0
  %735 = vmatprep.mubr.f32.mxu0 0.0
  %736 = vmatmul.mubr.f32.gmra.mrb[0].mxu0 %v660
  %v737 = vpop.f32.mrb[0].mxu0
  %v738 = vadd.f32 %v130, %v737
  %v739 = vpop.f32.mrb[0].mxu0
  %740 = vmatprep.mubr.f32.mxu0 0.0
  %741 = vmatmul.mubr.f32.gmra.mrb[0].mxu0 %v663
  %v742 = vpop.f32.mrb[0].mxu0
  %v743 = vadd.f32 %v135, %v742
  %v744 = vpop.f32.mrb[0].mxu0
  %745 = vmatprep.mubr.f32.mxu0 0.0
  %746 = vmatmul.mubr.f32.gmra.mrb[0].mxu0 %v666
  %v747 = vpop.f32.mrb[0].mxu0
  %v748 = vadd.f32 %v140, %v747
  %v749 = vpop.f32.mrb[0].mxu0
  %750 = vmatprep.mubr.f32.mxu0 0.0
  %751 = vmatmul.mubr.f32.gmra.mrb[0].mxu0 %v669
  %v752 = vpop.f32.mrb[0].mxu0
  %v753 = vadd.f32 %v145, %v752
  %v754 = vpop.f32.mrb[0].mxu0
  %755 = vdwg.mxu0
  %v756 = vmax.f32 %v738, %v743
  %v757 = vmax.f32 %v756, %v748
  %v758 = vmax.f32 %v757, %v753
  %v760 = vsel %vm50, %v352, 0
  %v763 = vsel %vm50, %v353, 0
  %v766 = vsel %vm50, %v354, 0
  %v769 = vsel %vm50, %v355, 0
  %v772 = vsel %vm50, %v356, 0
  %v775 = vsel %vm50, %v357, 0
  %v778 = vsel %vm50, %v358, 0
  %v781 = vsel %vm50, %v359, 0
  %783 = vmatprep.subr.mxu0 0.0
  %784 = vmatpush1.msra.mxu0 %v758
  %785 = vmatprep.subr.mxu0 0.0
  %786 = vmatpush1.msra.mxu0 0.0
  %787 = vmatprep.subr.mxu0 0.0
  %788 = vmatpush1.msra.mxu0 0.0
  %789 = vmatprep.subr.mxu0 0.0
  %790 = vmatpush1.msra.mxu0 0.0
  %791 = vmatprep.subr.mxu0 0.0
  %792 = vmatpush1.msra.mxu0 0.0
  %793 = vmatprep.subr.mxu0 0.0
  %794 = vmatpush1.msra.mxu0 0.0
  %795 = vmatprep.subr.mxu0 0.0
  %796 = vmatpush1.msra.mxu0 0.0
  %797 = vmatprep.subr.mxu0 0.0
  %798 = vmatpush1.msra.mxu0 0.0
  %799 = vmatprep.subr.mxu0 0.0
  %800 = vmatpush1.msra.mxu0 0.0
  %801 = vmatprep.subr.mxu0 0.0
  %802 = vmatpush1.msra.mxu0 0.0
  %803 = vmatprep.subr.mxu0 0.0
  %804 = vmatpush1.msra.mxu0 0.0
  %805 = vmatprep.subr.mxu0 0.0
  %806 = vmatpush1.msra.mxu0 0.0
  %807 = vmatprep.subr.mxu0 0.0
  %808 = vmatpush1.msra.mxu0 0.0
  %809 = vmatprep.subr.mxu0 0.0
  %810 = vmatpush1.msra.mxu0 0.0
  %811 = vmatprep.subr.mxu0 0.0
  %812 = vmatpush1.msra.mxu0 0.0
  %813 = vmatprep.subr.mxu0 0.0
  %814 = vmatpush1.msra.mxu0 0.0
  %815 = vmatprep.subr.mxu0 0.0
  %816 = vmatpush1.msra.mxu0 0.0
  %817 = vmatprep.subr.mxu0 0.0
  %818 = vmatpush1.msra.mxu0 0.0
  %819 = vmatprep.subr.mxu0 0.0
  %820 = vmatpush1.msra.mxu0 0.0
  %821 = vmatprep.subr.mxu0 0.0
  %822 = vmatpush1.msra.mxu0 0.0
  %823 = vmatprep.subr.mxu0 0.0
  %824 = vmatpush1.msra.mxu0 0.0
  %825 = vmatprep.subr.mxu0 0.0
  %826 = vmatpush1.msra.mxu0 0.0
  %827 = vmatprep.subr.mxu0 0.0
  %828 = vmatpush1.msra.mxu0 0.0
  %829 = vmatprep.subr.mxu0 0.0
  %830 = vmatpush1.msra.mxu0 0.0
  %831 = vmatprep.subr.mxu0 0.0
  %832 = vmatpush1.msra.mxu0 0.0
  %833 = vmatprep.subr.mxu0 0.0
  %834 = vmatpush1.msra.mxu0 0.0
  %835 = vmatprep.subr.mxu0 0.0
  %836 = vmatpush1.msra.mxu0 0.0
  %837 = vmatprep.subr.mxu0 0.0
  %838 = vmatpush1.msra.mxu0 0.0
  %839 = vmatprep.subr.mxu0 0.0
  %840 = vmatpush1.msra.mxu0 0.0
  %841 = vmatprep.subr.mxu0 0.0
  %842 = vmatpush1.msra.mxu0 0.0
  %843 = vmatprep.subr.mxu0 0.0
  %844 = vmatpush1.msra.mxu0 0.0
  %845 = vmatprep.subr.mxu0 0.0
  %846 = vmatpush1.msra.mxu0 0.0
  %847 = vmatprep.mubr.f32.mxu0 0.0
  %848 = vmatmul.mubr.f32.gmra.mrb[0].mxu0 %v760
  %v849 = vpop.f32.mrb[0].mxu0
  %v850 = vadd.f32 0.0, %v849
  %v851 = vpop.f32.mrb[0].mxu0
  %852 = vmatprep.mubr.f32.mxu0 0.0
  %853 = vmatmul.mubr.f32.gmra.mrb[0].mxu0 %v763
  %v854 = vpop.f32.mrb[0].mxu0
  %v855 = vadd.f32 0.0, %v854
  %v856 = vpop.f32.mrb[0].mxu0
  %857 = vmatprep.mubr.f32.mxu0 0.0
  %858 = vmatmul.mubr.f32.gmra.mrb[0].mxu0 %v766
  %v859 = vpop.f32.mrb[0].mxu0
  %v860 = vadd.f32 0.0, %v859
  %v861 = vpop.f32.mrb[0].mxu0
  %862 = vmatprep.mubr.f32.mxu0 0.0
  %863 = vmatmul.mubr.f32.gmra.mrb[0].mxu0 %v769
  %v864 = vpop.f32.mrb[0].mxu0
  %v865 = vadd.f32 0.0, %v864
  %v866 = vpop.f32.mrb[0].mxu0
  %867 = vmatprep.mubr.f32.mxu0 0.0
  %868 = vmatmul.mubr.f32.gmra.mrb[0].mxu0 %v772
  %v869 = vpop.f32.mrb[0].mxu0
  %v870 = vadd.f32 0.0, %v869
  %v871 = vpop.f32.mrb[0].mxu0
  %872 = vmatprep.mubr.f32.mxu0 0.0
  %873 = vmatmul.mubr.f32.gmra.mrb[0].mxu0 %v775
  %v874 = vpop.f32.mrb[0].mxu0
  %v875 = vadd.f32 0.0, %v874
  %v876 = vpop.f32.mrb[0].mxu0
  %877 = vmatprep.mubr.f32.mxu0 0.0
  %878 = vmatmul.mubr.f32.gmra.mrb[0].mxu0 %v778
  %v879 = vpop.f32.mrb[0].mxu0
  %v880 = vadd.f32 0.0, %v879
  %v881 = vpop.f32.mrb[0].mxu0
  %882 = vmatprep.mubr.f32.mxu0 0.0
  %883 = vmatmul.mubr.f32.gmra.mrb[0].mxu0 %v781
  %v884 = vpop.f32.mrb[0].mxu0
  %v885 = vadd.f32 0.0, %v884
  %v886 = vpop.f32.mrb[0].mxu0
  %887 = vdwg.mxu0
  %892 = vrot.lane.b32.xlu0 %v870, 32
  %v893 = vpop.permute.xlu0 %892
  %894 = vrot.lane.b32.xlu0 %v875, 32
  %v895 = vpop.permute.xlu0 %894
  %896 = vrot.lane.b32.xlu0 %v880, 32
  %v897 = vpop.permute.xlu0 %896
  %898 = vrot.lane.b32.xlu0 %v885, 32
  %v899 = vpop.permute.xlu0 %898
  %v904 = vsel %vm382, %v850, %v893
  %v905 = vsel %vm382, %v855, %v895
  %v906 = vsel %vm382, %v860, %v897
  %v907 = vsel %vm382, %v865, %v899
  %v909 = vsel %vm548, %v904, 0
  %v912 = vsel %vm548, %v905, 0
  %v915 = vsel %vm548, %v906, 0
  %v918 = vsel %vm548, %v907, 0
  %920 = vmatprep.subr.mxu0 0.0
  %921 = vmatpush1.msra.mxu0 %v33
  %922 = vmatprep.subr.mxu0 0.0
  %923 = vmatpush1.msra.mxu0 %v34
  %924 = vmatprep.subr.mxu0 0.0
  %925 = vmatpush1.msra.mxu0 %v35
  %926 = vmatprep.subr.mxu0 0.0
  %927 = vmatpush1.msra.mxu0 %v36
  %928 = vmatprep.subr.mxu0 0.0
  %929 = vmatpush1.msra.mxu0 %v37
  %930 = vmatprep.subr.mxu0 0.0
  %931 = vmatpush1.msra.mxu0 %v38
  %932 = vmatprep.subr.mxu0 0.0
  %933 = vmatpush1.msra.mxu0 %v39
  %934 = vmatprep.subr.mxu0 0.0
  %935 = vmatpush1.msra.mxu0 %v40
  %936 = vmatprep.subr.mxu0 0.0
  %937 = vmatpush1.msra.mxu0 0.0
  %938 = vmatprep.subr.mxu0 0.0
  %939 = vmatpush1.msra.mxu0 0.0
  %940 = vmatprep.subr.mxu0 0.0
  %941 = vmatpush1.msra.mxu0 0.0
  %942 = vmatprep.subr.mxu0 0.0
  %943 = vmatpush1.msra.mxu0 0.0
  %944 = vmatprep.subr.mxu0 0.0
  %945 = vmatpush1.msra.mxu0 0.0
  %946 = vmatprep.subr.mxu0 0.0
  %947 = vmatpush1.msra.mxu0 0.0
  %948 = vmatprep.subr.mxu0 0.0
  %949 = vmatpush1.msra.mxu0 0.0
  %950 = vmatprep.subr.mxu0 0.0
  %951 = vmatpush1.msra.mxu0 0.0
  %952 = vmatprep.subr.mxu0 0.0
  %953 = vmatpush1.msra.mxu0 0.0
  %954 = vmatprep.subr.mxu0 0.0
  %955 = vmatpush1.msra.mxu0 0.0
  %956 = vmatprep.subr.mxu0 0.0
  %957 = vmatpush1.msra.mxu0 0.0
  %958 = vmatprep.subr.mxu0 0.0
  %959 = vmatpush1.msra.mxu0 0.0
  %960 = vmatprep.subr.mxu0 0.0
  %961 = vmatpush1.msra.mxu0 0.0
  %962 = vmatprep.subr.mxu0 0.0
  %963 = vmatpush1.msra.mxu0 0.0
  %964 = vmatprep.subr.mxu0 0.0
  %965 = vmatpush1.msra.mxu0 0.0
  %966 = vmatprep.subr.mxu0 0.0
  %967 = vmatpush1.msra.mxu0 0.0
  %968 = vmatprep.subr.mxu0 0.0
  %969 = vmatpush1.msra.mxu0 0.0
  %970 = vmatprep.subr.mxu0 0.0
  %971 = vmatpush1.msra.mxu0 0.0
  %972 = vmatprep.subr.mxu0 0.0
  %973 = vmatpush1.msra.mxu0 0.0
  %974 = vmatprep.subr.mxu0 0.0
  %975 = vmatpush1.msra.mxu0 0.0
  %976 = vmatprep.subr.mxu0 0.0
  %977 = vmatpush1.msra.mxu0 0.0
  %978 = vmatprep.subr.mxu0 0.0
  %979 = vmatpush1.msra.mxu0 0.0
  %980 = vmatprep.subr.mxu0 0.0
  %981 = vmatpush1.msra.mxu0 0.0
  %982 = vmatprep.subr.mxu0 0.0
  %983 = vmatpush1.msra.mxu0 0.0
  %984 = vmatprep.mubr.f32.mxu0 0.0
  %985 = vmatmul.mubr.f32.gmra.mrb[0].mxu0 %v909
  %v986 = vpop.f32.mrb[0].mxu0
  %v987 = vadd.f32 0.0, %v986
  %v988 = vpop.f32.mrb[0].mxu0
  %989 = vmatprep.mubr.f32.mxu0 0.0
  %990 = vmatmul.mubr.f32.gmra.mrb[0].mxu0 %v912
  %v991 = vpop.f32.mrb[0].mxu0
  %v992 = vadd.f32 0.0, %v991
  %v993 = vpop.f32.mrb[0].mxu0
  %994 = vmatprep.mubr.f32.mxu0 0.0
  %995 = vmatmul.mubr.f32.gmra.mrb[0].mxu0 %v915
  %v996 = vpop.f32.mrb[0].mxu0
  %v997 = vadd.f32 0.0, %v996
  %v998 = vpop.f32.mrb[0].mxu0
  %999 = vmatprep.mubr.f32.mxu0 0.0
  %1000 = vmatmul.mubr.f32.gmra.mrb[0].mxu0 %v918
  %v1001 = vpop.f32.mrb[0].mxu0
  %v1002 = vadd.f32 0.0, %v1001
  %v1003 = vpop.f32.mrb[0].mxu0
  %1004 = vdwg.mxu0
  %v1005 = vadd.f32 %v637, %v987
  %v1006 = vadd.f32 %v642, %v992
  %v1007 = vadd.f32 %v647, %v997
  %v1008 = vadd.f32 %v652, %v1002
  %v1009 = vmax.f32 %v1005, 0.0
  %v1010 = vmax.f32 %v1006, 0.0
  %v1011 = vmax.f32 %v1007, 0.0
  %v1012 = vmax.f32 %v1008, 0.0
  %1013 = vmatprep.subr.mxu0 0.0
  %1014 = vmatpush1.msra.mxu0 %v1009
  %1015 = vmatprep.subr.mxu0 0.0
  %1016 = vmatpush1.msra.mxu0 %v1010
  %1017 = vmatprep.subr.mxu0 0.0
  %1018 = vmatpush1.msra.mxu0 %v1011
  %1019 = vmatprep.subr.mxu0 0.0
  %1020 = vmatpush1.msra.mxu0 %v1012
  %1021 = vmatprep.subr.mxu0 0.0
  %1022 = vmatpush1.msra.mxu0 0.0
  %1023 = vmatprep.subr.mxu0 0.0
  %1024 = vmatpush1.msra.mxu0 0.0
  %1025 = vmatprep.subr.mxu0 0.0
  %1026 = vmatpush1.msra.mxu0 0.0
  %1027 = vmatprep.subr.mxu0 0.0
  %1028 = vmatpush1.msra.mxu0 0.0
  %1029 = vmatprep.subr.mxu0 0.0
  %1030 = vmatpush1.msra.mxu0 0.0
  %1031 = vmatprep.subr.mxu0 0.0
  %1032 = vmatpush1.msra.mxu0 0.0
  %1033 = vmatprep.subr.mxu0 0.0
  %1034 = vmatpush1.msra.mxu0 0.0
  %1035 = vmatprep.subr.mxu0 0.0
  %1036 = vmatpush1.msra.mxu0 0.0
  %1037 = vmatprep.subr.mxu0 0.0
  %1038 = vmatpush1.msra.mxu0 0.0
  %1039 = vmatprep.subr.mxu0 0.0
  %1040 = vmatpush1.msra.mxu0 0.0
  %1041 = vmatprep.subr.mxu0 0.0
  %1042 = vmatpush1.msra.mxu0 0.0
  %1043 = vmatprep.subr.mxu0 0.0
  %1044 = vmatpush1.msra.mxu0 0.0
  %1045 = vmatprep.subr.mxu0 0.0
  %1046 = vmatpush1.msra.mxu0 0.0
  %1047 = vmatprep.subr.mxu0 0.0
  %1048 = vmatpush1.msra.mxu0 0.0
  %1049 = vmatprep.subr.mxu0 0.0
  %1050 = vmatpush1.msra.mxu0 0.0
  %1051 = vmatprep.subr.mxu0 0.0
  %1052 = vmatpush1.msra.mxu0 0.0
  %1053 = vmatprep.subr.mxu0 0.0
  %1054 = vmatpush1.msra.mxu0 0.0
  %1055 = vmatprep.subr.mxu0 0.0
  %1056 = vmatpush1.msra.mxu0 0.0
  %1057 = vmatprep.subr.mxu0 0.0
  %1058 = vmatpush1.msra.mxu0 0.0
  %1059 = vmatprep.subr.mxu0 0.0
  %1060 = vmatpush1.msra.mxu0 0.0
  %1061 = vmatprep.subr.mxu0 0.0
  %1062 = vmatpush1.msra.mxu0 0.0
  %1063 = vmatprep.subr.mxu0 0.0
  %1064 = vmatpush1.msra.mxu0 0.0
  %1065 = vmatprep.subr.mxu0 0.0
  %1066 = vmatpush1.msra.mxu0 0.0
  %1067 = vmatprep.subr.mxu0 0.0
  %1068 = vmatpush1.msra.mxu0 0.0
  %1069 = vmatprep.subr.mxu0 0.0
  %1070 = vmatpush1.msra.mxu0 0.0
  %1071 = vmatprep.subr.mxu0 0.0
  %1072 = vmatpush1.msra.mxu0 0.0
  %1073 = vmatprep.subr.mxu0 0.0
  %1074 = vmatpush1.msra.mxu0 0.0
  %1075 = vmatprep.subr.mxu0 0.0
  %1076 = vmatpush1.msra.mxu0 0.0
  %1077 = vmatprep.mubr.f32.mxu0 0.0
  %1078 = vmatmul.mubr.f32.gmra.mrb[0].mxu0 %v660
  %v1079 = vpop.f32.mrb[0].mxu0
  %v1080 = vadd.f32 %v130, %v1079
  %v1081 = vpop.f32.mrb[0].mxu0
  %1082 = vmatprep.mubr.f32.mxu0 0.0
  %1083 = vmatmul.mubr.f32.gmra.mrb[0].mxu0 %v663
  %v1084 = vpop.f32.mrb[0].mxu0
  %v1085 = vadd.f32 %v135, %v1084
  %v1086 = vpop.f32.mrb[0].mxu0
  %1087 = vmatprep.mubr.f32.mxu0 0.0
  %1088 = vmatmul.mubr.f32.gmra.mrb[0].mxu0 %v666
  %v1089 = vpop.f32.mrb[0].mxu0
  %v1090 = vadd.f32 %v140, %v1089
  %v1091 = vpop.f32.mrb[0].mxu0
  %1092 = vmatprep.mubr.f32.mxu0 0.0
  %1093 = vmatmul.mubr.f32.gmra.mrb[0].mxu0 %v669
  %v1094 = vpop.f32.mrb[0].mxu0
  %v1095 = vadd.f32 %v145, %v1094
  %v1096 = vpop.f32.mrb[0].mxu0
  %1097 = vdwg.mxu0
  %v1098 = vmax.f32 %v1080, %v1085
  %v1099 = vmax.f32 %v1098, %v1090
  %v1100 = vmax.f32 %v1099, %v1095
  %v1101 = vadd.f32 %v1100, %v758
  %v1102 = vld [vmem:[%s7] sm:$0xff]
  %v1103 = vld [vmem:[%s7 + $0x8] sm:$0xff]
  %v1104 = vld [vmem:[%s7 + $0x10] sm:$0xff]
  %v1105 = vld [vmem:[%s7 + $0x18] sm:$0xff]
  %v1106 = vlaneseq
  %v1107 = vshrl.u32 %v1106, 7
  %v1108 = vsub.s32 2, %v1107
  %v1109 = vrot.slane %v32, %v1108
  %v1111 = vsel %vm382, %v758, 0
  %v1114 = vsel %vm382, %v1101, 0
  %1116 = vmatprep.subr.mxu0 0.0
  %1117 = vmatpush1.msra.mxu0 %v1102
  %1118 = vmatprep.subr.mxu0 0.0
  %1119 = vmatpush1.msra.mxu0 %v1103
  %1120 = vmatprep.subr.mxu0 0.0
  %1121 = vmatpush1.msra.mxu0 %v1104
  %1122 = vmatprep.subr.mxu0 0.0
  %1123 = vmatpush1.msra.mxu0 %v1105
  %1124 = vmatprep.subr.mxu0 0.0
  %1125 = vmatpush1.msra.mxu0 0.0
  %1126 = vmatprep.subr.mxu0 0.0
  %1127 = vmatpush1.msra.mxu0 0.0
  %1128 = vmatprep.subr.mxu0 0.0
  %1129 = vmatpush1.msra.mxu0 0.0
  %1130 = vmatprep.subr.mxu0 0.0
  %1131 = vmatpush1.msra.mxu0 0.0
  %1132 = vmatprep.subr.mxu0 0.0
  %1133 = vmatpush1.msra.mxu0 0.0
  %1134 = vmatprep.subr.mxu0 0.0
  %1135 = vmatpush1.msra.mxu0 0.0
  %1136 = vmatprep.subr.mxu0 0.0
  %1137 = vmatpush1.msra.mxu0 0.0
  %1138 = vmatprep.subr.mxu0 0.0
  %1139 = vmatpush1.msra.mxu0 0.0
  %1140 = vmatprep.subr.mxu0 0.0
  %1141 = vmatpush1.msra.mxu0 0.0
  %1142 = vmatprep.subr.mxu0 0.0
  %1143 = vmatpush1.msra.mxu0 0.0
  %1144 = vmatprep.subr.mxu0 0.0
  %1145 = vmatpush1.msra.mxu0 0.0
  %1146 = vmatprep.subr.mxu0 0.0
  %1147 = vmatpush1.msra.mxu0 0.0
  %1148 = vmatprep.subr.mxu0 0.0
  %1149 = vmatpush1.msra.mxu0 0.0
  %1150 = vmatprep.subr.mxu0 0.0
  %1151 = vmatpush1.msra.mxu0 0.0
  %1152 = vmatprep.subr.mxu0 0.0
  %1153 = vmatpush1.msra.mxu0 0.0
  %1154 = vmatprep.subr.mxu0 0.0
  %1155 = vmatpush1.msra.mxu0 0.0
  %1156 = vmatprep.subr.mxu0 0.0
  %1157 = vmatpush1.msra.mxu0 0.0
  %1158 = vmatprep.subr.mxu0 0.0
  %1159 = vmatpush1.msra.mxu0 0.0
  %1160 = vmatprep.subr.mxu0 0.0
  %1161 = vmatpush1.msra.mxu0 0.0
  %1162 = vmatprep.subr.mxu0 0.0
  %1163 = vmatpush1.msra.mxu0 0.0
  %1164 = vmatprep.subr.mxu0 0.0
  %1165 = vmatpush1.msra.mxu0 0.0
  %1166 = vmatprep.subr.mxu0 0.0
  %1167 = vmatpush1.msra.mxu0 0.0
  %1168 = vmatprep.subr.mxu0 0.0
  %1169 = vmatpush1.msra.mxu0 0.0
  %1170 = vmatprep.subr.mxu0 0.0
  %1171 = vmatpush1.msra.mxu0 0.0
  %1172 = vmatprep.subr.mxu0 0.0
  %1173 = vmatpush1.msra.mxu0 0.0
  %1174 = vmatprep.subr.mxu0 0.0
  %1175 = vmatpush1.msra.mxu0 0.0
  %1176 = vmatprep.subr.mxu0 0.0
  %1177 = vmatpush1.msra.mxu0 0.0
  %1178 = vmatprep.subr.mxu0 0.0
  %1179 = vmatpush1.msra.mxu0 0.0
  %1180 = vmatprep.mubr.f32.mxu0 0.0
  %1181 = vmatmul.mubr.f32.gmra.mrb[0].mxu0 %v1111
  %v1182 = vpop.f32.mrb[0].mxu0
  %v1183 = vadd.f32 %v1109, %v1182
  %v1184 = vpop.f32.mrb[0].mxu0
  %1185 = vmatprep.mubr.f32.mxu0 0.0
  %1186 = vmatmul.mubr.f32.gmra.mrb[0].mxu0 %v1114
  %v1187 = vpop.f32.mrb[0].mxu0
  %v1188 = vadd.f32 %v1109, %v1187
  %v1189 = vpop.f32.mrb[0].mxu0
  %1190 = vdwg.mxu0
  %vm1191 = vcmask 130048
  %1192 = vst.msk [vmem:[%s9] sm:$0xff] %vm1191, %v1183
  %1193 = vst.msk [vmem:[%s9 + $0x8] sm:$0xff] %vm1191, %v1188
  // Predicated region
  $region38: #{sparse_mpnn_forward.1} parent=0 // pred_check
    _
  $region39: #{sparse_mpnn_forward.1} parent=0 // pred_check_branch
    %1195 = sbr.rel (0) target = $region41
  $region40: #{sparse_mpnn_forward.1} parent=0 // pred_region
    _
  $region41: #{sparse_mpnn_forward.1} parent=0 // pred_fallthru
    _
  // Predicated region
  $region42: #{sparse_mpnn_forward.1} parent=0 // pred_check
    _
  $region43: #{sparse_mpnn_forward.1} parent=0 // pred_check_branch
    %1197 = sbr.rel (0) target = $region45
  $region44: #{sparse_mpnn_forward.1} parent=0 // pred_region
    _
  $region45: #{sparse_mpnn_forward.1} parent=0 // pred_fallthru
    _

</llo_original>
